<compile_context>
chip_gen: v7x
topology: tpu7x:2x2x1
jax: 0.10.0
libtpu: 0.0.40
codegen_flags: <defaults>
</compile_context>

<pallas_src>
import math

import jax
import jax.numpy as jnp
from jax import lax
from jax.experimental import pallas as pl
from jax.experimental.pallas import tpu as pltpu

_EPS = 1e-15
_BALL_EPS = 1e-3
_CURVATURE = 1.0  # c


def _round_up(v, m):
    return (v + m - 1) // m * m


def _cdiv(a, b):
    return (a + b - 1) // b


def _vmem_cap_bytes():
    try:
        info = pltpu.get_tpu_info()
        return int(getattr(info, "vmem_capacity_bytes", 64 << 20))
    except Exception:
        return 64 << 20  # conservative (v7x-sized) fallback


def _pick_tb(B, block_b):
    nsteps = _cdiv(B, block_b)
    if B >= 16:
        nsteps = max(nsteps, 2)  # let v7x shard the batch across its 2 TCs
    return _round_up(_cdiv(B, nsteps), 8)


def _mobius_linear_kernel(x_ref, wt_ref, hb_ref, cy2_ref, o_ref, mx_acc, x2_acc):
    c = jnp.float32(_CURVATURE)
    sqrt_c = jnp.sqrt(c)
    maxnorm = (1.0 - _BALL_EPS) / sqrt_c

    k = pl.program_id(1)
    nk = pl.num_programs(1)

    @pl.when(k == 0)
    def _():
        mx_acc[...] = jnp.zeros_like(mx_acc)
        x2_acc[...] = jnp.zeros_like(x2_acc)

    # ---- Mobius matrix-vector product: bf16 MXU matmul, f32 accumulate ----
    xf = x_ref[...].astype(jnp.float32)                 # (TB, tk)
    xb = x_ref[...].astype(jnp.bfloat16)
    mx_acc[...] += jnp.dot(xb, wt_ref[...], preferred_element_type=jnp.float32)
    x2_acc[...] += jnp.sum(xf * xf, axis=-1, keepdims=True)   # reduction #1

    @pl.when(k == nk - 1)
    def _():
        mx = mx_acc[...]                                # (TB, Op)
        x2 = x2_acc[...]                                # (TB, 1)
        hb = hb_ref[...].astype(jnp.float32)            # (1, Op) = expmap0(bias)
        c_y2 = cy2_ref[0]                               # scalar: c * ||hb||^2
        y2 = c_y2 * (1.0 / c)

        mx2 = jnp.sum(mx * mx, axis=-1, keepdims=True)  # reduction #2
        mxy = jnp.sum(mx * hb, axis=-1, keepdims=True)  # reduction #3

        x2_s = jnp.maximum(x2, _EPS)
        mx2_s = jnp.maximum(mx2, _EPS)
        x_norm = jnp.sqrt(x2_s)
        mx_norm = jnp.sqrt(mx2_s)
        inv_x_norm = lax.rsqrt(x2_s)                    # EUP
        inv_mx_norm = lax.rsqrt(mx2_s)                  # EUP

        # artanh(sqrt(c) * ||x||), clamped inside (-1, 1)
        xn_c = jnp.clip(sqrt_c * x_norm, 0.0, 1.0 - 1e-5)
        artanh_xn = 0.5 * jnp.log((1.0 + xn_c) / (1.0 - xn_c))

        # per-row scalar s so that res = s * Mx  (rows with Mx == 0 -> origin)
        s = jnp.tanh(mx_norm * inv_x_norm * artanh_xn) * (inv_mx_norm / sqrt_c)
        s = jnp.where(mx2 < 1e-24, jnp.zeros_like(s), s)

        # project res onto the ball; ||res||^2 analytic, proj fused into s
        r2 = s * s * mx2
        proj = jnp.minimum(1.0, maxnorm * lax.rsqrt(jnp.maximum(r2, _EPS)))
        s = s * proj
        r2 = r2 * proj * proj

        # ---- Mobius addition res (+) hb (all per-row scalars) ----
        xy = s * mxy                                    # <res, hb>
        two_cxy = 2.0 * c * xy
        a = 1.0 + two_cxy + c_y2
        b = 1.0 - c * r2
        den = 1.0 + two_cxy + c * r2 * c_y2
        den_safe = jnp.where(den >= 0.0,
                             jnp.maximum(den, _EPS),
                             jnp.minimum(den, -_EPS))   # sign-preserving clamp
        recip = pl.reciprocal(den_safe, approx=True)    # EUP divide

        # ||out||^2 in closed form (no cross-lane reduction):
        # num = a*res + b*hb  ->  ||num||^2 = a^2 r2 + 2ab<res,hb> + b^2 ||hb||^2
        num2 = a * a * r2 + 2.0 * a * b * xy + b * b * y2
        o2 = num2 * recip * recip
        proj_o = jnp.minimum(1.0, maxnorm * lax.rsqrt(jnp.maximum(o2, _EPS)))

        scale_mx = a * s * recip * proj_o               # per-row scalar on Mx
        scale_hb = b * recip * proj_o                   # per-row scalar on hb
        o_ref[...] = (scale_mx * mx + scale_hb * hb).astype(o_ref.dtype)


def _prepare_params(weight_t, bias, *, max_resident_weight_bytes=24 << 20):
    """One-time (init) padding + bias expmap0. weight_t: (F, O), bias: (O,)."""
    F, O = weight_t.shape
    c = _CURVATURE
    sqrt_c = math.sqrt(c)

    Op = max(_round_up(O, 128), 128)
    if F * Op * 2 <= max_resident_weight_bytes:
        tk, Fp = F, F                                   # resident weight, no F pad
    else:
        tk = 512                                        # stream the weight over K
        Fp = _round_up(F, tk)
    nk = Fp // tk

    wtp = jnp.zeros((Fp, Op), jnp.bfloat16).at[:F, :O].set(
        weight_t.astype(jnp.bfloat16))

    b = bias.astype(jnp.float32)
    b_norm = jnp.sqrt(jnp.maximum(jnp.sum(b * b), _EPS))
    hb = jnp.tanh(sqrt_c * b_norm) * b / (sqrt_c * b_norm)          # expmap0(bias)
    hbp = jnp.zeros((1, Op), jnp.float32).at[0, :O].set(hb)
    c_y2 = (c * jnp.sum(hb * hb)).reshape(1).astype(jnp.float32)

    return wtp, hbp, c_y2, tk, nk


def mobius_linear_padded(x, wtp, hbp, c_y2, n_out, *, tk, nk, block_b=512):
    """x: (B, F); wtp: (Fp, Op) bf16 pre-padded; hbp: (1, Op); c_y2: (1,)."""
    B, F = x.shape
    Fp, Op = wtp.shape
    assert Fp == tk * nk and F <= Fp

    tb = _pick_tb(B, block_b)
    Bp = _round_up(B, tb)
    if Bp == B and Fp == F:
        xp = x                                          # no pad copy needed
    else:
        xp = jnp.zeros((Bp, Fp), x.dtype).at[:B, :F].set(x)
    grid = (Bp // tb, nk)

    # VMEM budget: double-buffer only the streaming x/out tiles; the weight is
    # single-buffered when resident (nk == 1), double-buffered when K-tiled.
    ib = jnp.dtype(x.dtype).itemsize
    w_bufs = 1 if nk == 1 else 2
    step_bytes = (2 * tb * tk * ib            # x tiles
                  + w_bufs * tk * Op * 2      # bf16 weight
                  + 2 * tb * Op * ib          # out tiles
                  + Op * 4                    # hb
                  + tb * Op * 4 + tb * 128 * 4)  # f32 accumulators
    cap = _vmem_cap_bytes()                   # 128 MiB-class v5e/v6e, 64 MiB v7x
    vmem_limit = int(max(16 << 20, min(step_bytes + (4 << 20), cap - (8 << 20))))

    if nk == 1:
        wt_spec = pl.BlockSpec((tk, Op), lambda i, k: (k, 0),
                               pipeline_mode=pl.Buffered(1))
    else:
        wt_spec = pl.BlockSpec((tk, Op), lambda i, k: (k, 0))

    out = pl.pallas_call(
        _mobius_linear_kernel,
        out_shape=jax.ShapeDtypeStruct((Bp, Op), x.dtype),
        grid_spec=pltpu.PrefetchScalarGridSpec(
            num_scalar_prefetch=0,
            grid=grid,
            in_specs=[
                pl.BlockSpec((tb, tk), lambda i, k: (i, k)),
                wt_spec,
                pl.BlockSpec((1, Op), lambda i, k: (0, 0)),
                pl.BlockSpec(memory_space=pltpu.MemorySpace.SMEM),
            ],
            out_specs=pl.BlockSpec((tb, Op), lambda i, k: (i, 0)),
            scratch_shapes=[
                pltpu.VMEM((tb, Op), jnp.float32),   # Mx accumulator
                pltpu.VMEM((tb, 1), jnp.float32),    # ||x||^2 accumulator
            ],
        ),
        compiler_params=pltpu.CompilerParams(
            dimension_semantics=("parallel", "arbitrary"),
            vmem_limit_bytes=vmem_limit,
        ),
    )(xp, wtp, hbp, c_y2)

    return out[:B, :n_out]


def _mobius_linear_ref(x, weight_t, bias):
    """Pure-JAX reference (original formulation) for correctness checking."""
    c = _CURVATURE
    sqrt_c = math.sqrt(c)
    maxnorm = (1.0 - _BALL_EPS) / sqrt_c
    mx = x @ weight_t
    x_norm = jnp.sqrt(jnp.maximum(jnp.sum(x * x, -1, keepdims=True), _EPS))
    mx_norm = jnp.sqrt(jnp.maximum(jnp.sum(mx * mx, -1, keepdims=True), _EPS))
    xn = jnp.clip(sqrt_c * x_norm, 0.0, 1.0 - 1e-5)
    artanh = 0.5 * jnp.log((1.0 + xn) / (1.0 - xn))
    res = jnp.tanh(mx_norm / x_norm * artanh) * mx / (mx_norm * sqrt_c)
    res = jnp.where(jnp.sum(jnp.abs(mx), -1, keepdims=True) < 1e-12, 0.0, res)
    rn = jnp.sqrt(jnp.maximum(jnp.sum(res * res, -1, keepdims=True), _EPS))
    res = jnp.where(rn > maxnorm, res / rn * maxnorm, res)
    bn = jnp.sqrt(jnp.maximum(jnp.sum(bias * bias), _EPS))
    hb = jnp.tanh(sqrt_c * bn) * bias / (sqrt_c * bn)
    xy = jnp.sum(res * hb[None, :], -1, keepdims=True)
    x2 = jnp.sum(res * res, -1, keepdims=True)
    y2 = jnp.sum(hb * hb)
    num = (1.0 + 2.0 * c * xy + c * y2) * res + (1.0 - c * x2) * hb[None, :]
    den = 1.0 + 2.0 * c * xy + c * c * x2 * y2
    out = num / jnp.maximum(den, _EPS)
    on = jnp.sqrt(jnp.maximum(jnp.sum(out * out, -1, keepdims=True), _EPS))
    return jnp.where(on > maxnorm, out / on * maxnorm, out)


class NetHypePlusPallas:
    """Mirror of NetHypePlus: a single MobiusLinearPlus layer."""

    def __init__(self, n_feature, n_output, key):
        kw, kb = jax.random.split(key)
        bound = 1.0 / math.sqrt(n_feature)
        self.n_feature = n_feature
        self.n_output = n_output
        # weight stored pre-transposed (F, O) -> no per-call transpose
        self.weight_t = jax.random.uniform(
            kw, (n_feature, n_output), jnp.float32, minval=-bound, maxval=bound)
        self.bias = jax.random.uniform(
            kb, (n_output,), jnp.float32, minval=-bound, maxval=bound)
        # hoisted & cached: padded bf16 weight, expmap0(bias), c*||hb||^2
        (self.wtp, self.hbp, self.c_y2,
         self.tk, self.nk) = _prepare_params(self.weight_t, self.bias)

    def __call__(self, x):
        return mobius_linear_padded(x, self.wtp, self.hbp, self.c_y2,
                                    self.n_output, tk=self.tk, nk=self.nk)


if __name__ == "__main__":
    key = jax.random.PRNGKey(0)
    kx, kparams = jax.random.split(key)

    B, n_feature, n_output = 8, 32, 16
    # inputs are points inside the unit Poincare ball
    x = 0.1 * jax.random.normal(kx, (B, n_feature), jnp.float32)

    model = NetHypePlusPallas(n_feature, n_output, kparams)
    y = model(x)
    y = jax.block_until_ready(y)

    assert y.shape == (B, n_output)
    assert bool(jnp.all(jnp.isfinite(y)))

    y_ref = _mobius_linear_ref(x, model.weight_t, model.bias)
    err = float(jnp.max(jnp.abs(y - y_ref)))
    assert err < 1e-2, f"mismatch vs reference: max abs err {err}"

    print("KERNEL_OK")
</pallas_src>

<mosaic_0001>
module attributes {stable_mosaic.version = 11 : i64} {
  func.func @_mobius_linear_kernel(%arg0: i32, %arg1: i32, %arg2: memref<8x32xf32, #tpu.memory_space<vmem>>, %arg3: memref<32x128xbf16, #tpu.memory_space<vmem>>, %arg4: memref<1x128xf32, #tpu.memory_space<vmem>>, %arg5: memref<1xf32, #tpu.memory_space<smem>>, %arg6: memref<8x128xf32, #tpu.memory_space<vmem>>, %arg7: memref<8x128xf32, #tpu.memory_space<vmem>>, %arg8: memref<8x1xf32, #tpu.memory_space<vmem>>) attributes {dimension_semantics = [#tpu.dimension_semantics<parallel>, #tpu.dimension_semantics<arbitrary>], iteration_bounds = array<i64: 1, 1>, scalar_prefetch = 0 : i64, scratch_operands = 2 : i64, tpu.core_type = #tpu.core_type<tc>, window_params = [{transform_indices = @transform_0, window_bounds = array<i64: 8, 32>}, {pipeline_mode = #tpu.pipeline_mode<synchronous>, transform_indices = @transform_1, window_bounds = array<i64: 32, 128>}, {pipeline_mode = #tpu.pipeline_mode<synchronous>, transform_indices = @transform_2, window_bounds = array<i64: 1, 128>}, {transform_indices = @transform_3, window_bounds = array<i64: 1>}, {transform_indices = @transform_4, window_bounds = array<i64: 8, 128>}]} {
    %cst = arith.constant 1.000000e+00 : f32
    %0 = math.sqrt %cst : f32
    %cst_0 = arith.constant 9.990000e-01 : f32
    %1 = arith.divf %cst_0, %0 : f32
    %c0_i32 = arith.constant 0 : i32
    %2 = arith.cmpi eq, %arg1, %c0_i32 : i32
    %3 = arith.extui %2 : i1 to i32
    %c0_i32_1 = arith.constant 0 : i32
    %4 = arith.cmpi ne, %3, %c0_i32_1 : i32
    scf.if %4 {
      %cst_20 = arith.constant 0.000000e+00 : f32
      %22 = vector.broadcast %cst_20 : f32 to vector<8x128xf32>
      %c0_21 = arith.constant 0 : index
      %c0_22 = arith.constant 0 : index
      %23 = vector.load %arg7[%c0_21, %c0_22] : memref<8x128xf32, #tpu.memory_space<vmem>>, vector<8x128xf32>
      tpu.vector_store %arg7[%c0_21, %c0_22], %22 {strides = array<i32>} : memref<8x128xf32, #tpu.memory_space<vmem>>, vector<8x128xf32>,
      %cst_23 = arith.constant 0.000000e+00 : f32
      %24 = vector.broadcast %cst_23 : f32 to vector<8x1xf32>
      %c0_24 = arith.constant 0 : index
      %c0_25 = arith.constant 0 : index
      %25 = vector.load %arg8[%c0_24, %c0_25] : memref<8x1xf32, #tpu.memory_space<vmem>>, vector<8x1xf32>
      tpu.vector_store %arg8[%c0_24, %c0_25], %24 {strides = array<i32>} : memref<8x1xf32, #tpu.memory_space<vmem>>, vector<8x1xf32>,
    } else {
    }
    %c0 = arith.constant 0 : index
    %c0_2 = arith.constant 0 : index
    %5 = vector.load %arg2[%c0, %c0_2] : memref<8x32xf32, #tpu.memory_space<vmem>>, vector<8x32xf32>
    %c0_3 = arith.constant 0 : index
    %c0_4 = arith.constant 0 : index
    %6 = vector.load %arg2[%c0_3, %c0_4] : memref<8x32xf32, #tpu.memory_space<vmem>>, vector<8x32xf32>
    %7 = arith.truncf %6 : vector<8x32xf32> to vector<8x32xbf16>
    %c0_5 = arith.constant 0 : index
    %c0_6 = arith.constant 0 : index
    %8 = vector.load %arg7[%c0_5, %c0_6] : memref<8x128xf32, #tpu.memory_space<vmem>>, vector<8x128xf32>
    %c0_7 = arith.constant 0 : index
    %c0_8 = arith.constant 0 : index
    %9 = vector.load %arg3[%c0_7, %c0_8] : memref<32x128xbf16, #tpu.memory_space<vmem>>, vector<32x128xbf16>
    %cst_9 = arith.constant dense<0.000000e+00> : vector<8x128xf32>
    %10 = tpu.matmul %7, %9, %cst_9 {dimension_numbers = #tpu.dot_dimension_numbers<[1], [0], [0], [1], [0, 0, 1, 1], [], []>} : vector<8x32xbf16>, vector<32x128xbf16>, vector<8x128xf32> -> vector<8x128xf32>
    %11 = arith.addf %8, %10 : vector<8x128xf32>
    %c0_10 = arith.constant 0 : index
    %c0_11 = arith.constant 0 : index
    %12 = vector.load %arg7[%c0_10, %c0_11] : memref<8x128xf32, #tpu.memory_space<vmem>>, vector<8x128xf32>
    tpu.vector_store %arg7[%c0_10, %c0_11], %11 {strides = array<i32>} : memref<8x128xf32, #tpu.memory_space<vmem>>, vector<8x128xf32>,
    %c0_12 = arith.constant 0 : index
    %c0_13 = arith.constant 0 : index
    %13 = vector.load %arg8[%c0_12, %c0_13] : memref<8x1xf32, #tpu.memory_space<vmem>>, vector<8x1xf32>
    %14 = arith.mulf %5, %5 : vector<8x32xf32>
    %cst_14 = arith.constant dense<0.000000e+00> : vector<8xf32>
    %15 = vector.multi_reduction <add>, %14, %cst_14 [1] : vector<8x32xf32> to vector<8xf32>
    %16 = vector.shape_cast %15 : vector<8xf32> to vector<8x1xf32>
    %17 = arith.addf %13, %16 : vector<8x1xf32>
    %c0_15 = arith.constant 0 : index
    %c0_16 = arith.constant 0 : index
    %18 = vector.load %arg8[%c0_15, %c0_16] : memref<8x1xf32, #tpu.memory_space<vmem>>, vector<8x1xf32>
    tpu.vector_store %arg8[%c0_15, %c0_16], %17 {strides = array<i32>} : memref<8x1xf32, #tpu.memory_space<vmem>>, vector<8x1xf32>,
    %c0_i32_17 = arith.constant 0 : i32
    %19 = arith.cmpi eq, %arg1, %c0_i32_17 : i32
    %20 = arith.extui %19 : i1 to i32
    %cst_18 = arith.constant 1.000000e+00 : f32
    %c0_i32_19 = arith.constant 0 : i32
    %21 = arith.cmpi ne, %20, %c0_i32_19 : i32
    scf.if %21 {
      %c0_20 = arith.constant 0 : index
      %c0_21 = arith.constant 0 : index
      %22 = vector.load %arg7[%c0_20, %c0_21] : memref<8x128xf32, #tpu.memory_space<vmem>>, vector<8x128xf32>
      %c0_22 = arith.constant 0 : index
      %c0_23 = arith.constant 0 : index
      %23 = vector.load %arg8[%c0_22, %c0_23] : memref<8x1xf32, #tpu.memory_space<vmem>>, vector<8x1xf32>
      %c0_24 = arith.constant 0 : index
      %c0_25 = arith.constant 0 : index
      %24 = vector.load %arg4[%c0_24, %c0_25] : memref<1x128xf32, #tpu.memory_space<vmem>>, vector<1x128xf32>
      %c0_26 = arith.constant 0 : index
      %25 = memref.load %arg5[%c0_26] : memref<1xf32, #tpu.memory_space<smem>>
      %cst_27 = arith.constant 1.000000e+00 : f32
      %26 = arith.divf %cst_27, %cst_18 : f32
      %27 = arith.mulf %25, %26 : f32
      %28 = arith.mulf %22, %22 : vector<8x128xf32>
      %cst_28 = arith.constant dense<0.000000e+00> : vector<8xf32>
      %29 = vector.multi_reduction <add>, %28, %cst_28 [1] : vector<8x128xf32> to vector<8xf32>
      %30 = vector.shape_cast %29 : vector<8xf32> to vector<8x1xf32>
      %31 = vector.broadcast %24 : vector<1x128xf32> to vector<8x128xf32>
      %32 = arith.mulf %22, %31 : vector<8x128xf32>
      %cst_29 = arith.constant dense<0.000000e+00> : vector<8xf32>
      %33 = vector.multi_reduction <add>, %32, %cst_29 [1] : vector<8x128xf32> to vector<8xf32>
      %34 = vector.shape_cast %33 : vector<8xf32> to vector<8x1xf32>
      %cst_30 = arith.constant 1.000000e-15 : f32
      %35 = vector.broadcast %cst_30 : f32 to vector<8x1xf32>
      %36 = arith.maximumf %23, %35 : vector<8x1xf32>
      %cst_31 = arith.constant 1.000000e-15 : f32
      %37 = vector.broadcast %cst_31 : f32 to vector<8x1xf32>
      %38 = arith.maximumf %30, %37 : vector<8x1xf32>
      %39 = math.sqrt %36 : vector<8x1xf32>
      %40 = math.sqrt %38 : vector<8x1xf32>
      %41 = math.rsqrt %36 : vector<8x1xf32>
      %42 = math.rsqrt %38 : vector<8x1xf32>
      %43 = vector.broadcast %0 : f32 to vector<8x1xf32>
      %44 = arith.mulf %43, %39 : vector<8x1xf32>
      %cst_32 = arith.constant 0.000000e+00 : f32
      %cst_33 = arith.constant 0.999989986 : f32
      %45 = vector.broadcast %cst_32 : f32 to vector<8x1xf32>
      %46 = arith.maximumf %45, %44 : vector<8x1xf32>
      %47 = vector.broadcast %cst_33 : f32 to vector<8x1xf32>
      %48 = arith.minimumf %47, %46 : vector<8x1xf32>
      %cst_34 = arith.constant 1.000000e+00 : f32
      %49 = vector.broadcast %cst_34 : f32 to vector<8x1xf32>
      %50 = arith.addf %49, %48 : vector<8x1xf32>
      %cst_35 = arith.constant 1.000000e+00 : f32
      %51 = vector.broadcast %cst_35 : f32 to vector<8x1xf32>
      %52 = arith.subf %51, %48 : vector<8x1xf32>
      %53 = arith.divf %50, %52 : vector<8x1xf32>
      %54 = math.log %53 : vector<8x1xf32>
      %cst_36 = arith.constant 5.000000e-01 : f32
      %55 = vector.broadcast %cst_36 : f32 to vector<8x1xf32>
      %56 = arith.mulf %55, %54 : vector<8x1xf32>
      %57 = arith.mulf %40, %41 : vector<8x1xf32>
      %58 = arith.mulf %57, %56 : vector<8x1xf32>
      %59 = math.tanh %58 : vector<8x1xf32>
      %60 = vector.broadcast %0 : f32 to vector<8x1xf32>
      %61 = arith.divf %42, %60 : vector<8x1xf32>
      %62 = arith.mulf %59, %61 : vector<8x1xf32>
      %cst_37 = arith.constant 1.000000e-24 : f32
      %63 = vector.broadcast %cst_37 : f32 to vector<8x1xf32>
      %64 = arith.cmpf olt, %30, %63 : vector<8x1xf32>
      %cst_38 = arith.constant 0.000000e+00 : f32
      %65 = vector.broadcast %cst_38 : f32 to vector<8x1xf32>
      %66 = arith.select %64, %65, %62 : vector<8x1xi1>, vector<8x1xf32>
      %67 = arith.mulf %66, %66 : vector<8x1xf32>
      %68 = arith.mulf %67, %30 : vector<8x1xf32>
      %cst_39 = arith.constant 1.000000e-15 : f32
      %69 = vector.broadcast %cst_39 : f32 to vector<8x1xf32>
      %70 = arith.maximumf %68, %69 : vector<8x1xf32>
      %71 = math.rsqrt %70 : vector<8x1xf32>
      %72 = vector.broadcast %1 : f32 to vector<8x1xf32>
      %73 = arith.mulf %72, %71 : vector<8x1xf32>
      %cst_40 = arith.constant 1.000000e+00 : f32
      %74 = vector.broadcast %cst_40 : f32 to vector<8x1xf32>
      %75 = arith.minimumf %74, %73 : vector<8x1xf32>
      %76 = arith.mulf %66, %75 : vector<8x1xf32>
      %77 = arith.mulf %68, %75 : vector<8x1xf32>
      %78 = arith.mulf %77, %75 : vector<8x1xf32>
      %79 = arith.mulf %76, %34 : vector<8x1xf32>
      %cst_41 = arith.constant 2.000000e+00 : f32
      %80 = arith.mulf %cst_41, %cst_18 : f32
      %81 = vector.broadcast %80 : f32 to vector<8x1xf32>
      %82 = arith.mulf %81, %79 : vector<8x1xf32>
      %cst_42 = arith.constant 1.000000e+00 : f32
      %83 = vector.broadcast %cst_42 : f32 to vector<8x1xf32>
      %84 = arith.addf %83, %82 : vector<8x1xf32>
      %85 = vector.broadcast %25 : f32 to vector<8x1xf32>
      %86 = arith.addf %84, %85 : vector<8x1xf32>
      %87 = vector.broadcast %cst_18 : f32 to vector<8x1xf32>
      %88 = arith.mulf %87, %78 : vector<8x1xf32>
      %cst_43 = arith.constant 1.000000e+00 : f32
      %89 = vector.broadcast %cst_43 : f32 to vector<8x1xf32>
      %90 = arith.subf %89, %88 : vector<8x1xf32>
      %cst_44 = arith.constant 1.000000e+00 : f32
      %91 = vector.broadcast %cst_44 : f32 to vector<8x1xf32>
      %92 = arith.addf %91, %82 : vector<8x1xf32>
      %93 = vector.broadcast %cst_18 : f32 to vector<8x1xf32>
      %94 = arith.mulf %93, %78 : vector<8x1xf32>
      %95 = vector.broadcast %25 : f32 to vector<8x1xf32>
      %96 = arith.mulf %94, %95 : vector<8x1xf32>
      %97 = arith.addf %92, %96 : vector<8x1xf32>
      %cst_45 = arith.constant 0.000000e+00 : f32
      %98 = vector.broadcast %cst_45 : f32 to vector<8x1xf32>
      %99 = arith.cmpf oge, %97, %98 : vector<8x1xf32>
      %cst_46 = arith.constant 1.000000e-15 : f32
      %100 = vector.broadcast %cst_46 : f32 to vector<8x1xf32>
      %101 = arith.maximumf %97, %100 : vector<8x1xf32>
      %cst_47 = arith.constant -1.000000e-15 : f32
      %102 = vector.broadcast %cst_47 : f32 to vector<8x1xf32>
      %103 = arith.minimumf %97, %102 : vector<8x1xf32>
      %104 = arith.select %99, %101, %103 : vector<8x1xi1>, vector<8x1xf32>
      %105 = tpu.reciprocal %104 {approx = true} : vector<8x1xf32> -> vector<8x1xf32>
      %106 = arith.mulf %86, %86 : vector<8x1xf32>
      %107 = arith.mulf %106, %78 : vector<8x1xf32>
      %cst_48 = arith.constant 2.000000e+00 : f32
      %108 = vector.broadcast %cst_48 : f32 to vector<8x1xf32>
      %109 = arith.mulf %108, %86 : vector<8x1xf32>
      %110 = arith.mulf %109, %90 : vector<8x1xf32>
      %111 = arith.mulf %110, %79 : vector<8x1xf32>
      %112 = arith.addf %107, %111 : vector<8x1xf32>
      %113 = arith.mulf %90, %90 : vector<8x1xf32>
      %114 = vector.broadcast %27 : f32 to vector<8x1xf32>
      %115 = arith.mulf %113, %114 : vector<8x1xf32>
      %116 = arith.addf %112, %115 : vector<8x1xf32>
      %117 = arith.mulf %116, %105 : vector<8x1xf32>
      %118 = arith.mulf %117, %105 : vector<8x1xf32>
      %cst_49 = arith.constant 1.000000e-15 : f32
      %119 = vector.broadcast %cst_49 : f32 to vector<8x1xf32>
      %120 = arith.maximumf %118, %119 : vector<8x1xf32>
      %121 = math.rsqrt %120 : vector<8x1xf32>
      %122 = vector.broadcast %1 : f32 to vector<8x1xf32>
      %123 = arith.mulf %122, %121 : vector<8x1xf32>
      %cst_50 = arith.constant 1.000000e+00 : f32
      %124 = vector.broadcast %cst_50 : f32 to vector<8x1xf32>
      %125 = arith.minimumf %124, %123 : vector<8x1xf32>
      %126 = arith.mulf %86, %76 : vector<8x1xf32>
      %127 = arith.mulf %126, %105 : vector<8x1xf32>
      %128 = arith.mulf %127, %125 : vector<8x1xf32>
      %129 = arith.mulf %90, %105 : vector<8x1xf32>
      %130 = arith.mulf %129, %125 : vector<8x1xf32>
      %131 = vector.broadcast %128 : vector<8x1xf32> to vector<8x128xf32>
      %132 = arith.mulf %131, %22 : vector<8x128xf32>
      %133 = vector.broadcast %130 : vector<8x1xf32> to vector<8x128xf32>
      %134 = vector.broadcast %24 : vector<1x128xf32> to vector<8x128xf32>
      %135 = arith.mulf %133, %134 : vector<8x128xf32>
      %136 = arith.addf %132, %135 : vector<8x128xf32>
      %c0_51 = arith.constant 0 : index
      %c0_52 = arith.constant 0 : index
      %137 = vector.load %arg6[%c0_51, %c0_52] : memref<8x128xf32, #tpu.memory_space<vmem>>, vector<8x128xf32>
      tpu.vector_store %arg6[%c0_51, %c0_52], %136 {strides = array<i32>} : memref<8x128xf32, #tpu.memory_space<vmem>>, vector<8x128xf32>,
    } else {
    }
    return
  }
  func.func @transform_0(%arg0: i32, %arg1: i32) -> (i32, i32) {
    %c0_i32 = arith.constant 0 : i32
    return %arg0, %arg1 : i32, i32
  }
  func.func @transform_1(%arg0: i32, %arg1: i32) -> (i32, i32) {
    %c0_i32 = arith.constant 0 : i32
    %c0_i32_0 = arith.constant 0 : i32
    return %arg1, %c0_i32 : i32, i32
  }
  func.func @transform_2(%arg0: i32, %arg1: i32) -> (i32, i32) {
    %c0_i32 = arith.constant 0 : i32
    %c0_i32_0 = arith.constant 0 : i32
    %c0_i32_1 = arith.constant 0 : i32
    return %c0_i32, %c0_i32_0 : i32, i32
  }
  func.func @transform_3(%arg0: i32, %arg1: i32) -> i32 {
    %c0_i32 = arith.constant 0 : i32
    %c0_i32_0 = arith.constant 0 : i32
    return %c0_i32 : i32
  }
  func.func @transform_4(%arg0: i32, %arg1: i32) -> (i32, i32) {
    %c0_i32 = arith.constant 0 : i32
    %c0_i32_0 = arith.constant 0 : i32
    return %arg0, %c0_i32 : i32, i32
  }
}

</mosaic_0001>

<llo_original>
// kernel: tpu_custom_call.1
$region0: #{tpu_custom_call.1}
  #allocation0 [shape = 'u32[]', space=smem, size = 0x4, offset = 0x4, fixed_abs, tag = 'smem constant byte address 0x4 - core index']
  #allocation1 [shape = 'u32[144,128]{1,0:T(1,128)}', space=vmem, size = 0x12000, scoped, tag = 'internal scratch']
  #allocation2 [shape = 'f32[8,128]{1,0:T(8,128)}', space=vmem, size = 0x1000, scoped, tag = 'scratch operand']
  #allocation3 [shape = 'f32[8,1]{1,0:T(8,128)}', space=vmem, size = 0x1000, scoped, tag = 'scratch operand']
  #allocation4 [shape = 'f32[1]{0:T(128)S(6)}', space=smem, size = 0x200, scoped, tag = 'scoped memory for tpu_custom_call.1']
  %s0 = inlined_call_operand.hbm [shape: f32[8,32], index: 0, kind: input, shape index: {}]
  %s1 = inlined_call_operand.hbm [shape: bf16[32,128], index: 1, kind: input, shape index: {}]
  %s2 = inlined_call_operand.vmem [shape: f32[1,128], index: 2, kind: input, shape index: {}]
  %s3 = inlined_call_operand.<no memory space> [shape: f32[1], index: 3, kind: input, shape index: {}]
  %s4 = inlined_call_operand.hbm [shape: f32[8,128], index: 4, kind: output, shape index: {}]
  %s5 = sld [smem:[#allocation0]]
  $region42: #{tpu_custom_call.1} parent=0
    _
  %s7 = ssub.s32 1, %s5
  %s8 = scalar_select 0, %s7, %s5
  %9 = sst [smem:[#allocation4]] %s3
  $region1: #{tpu_custom_call.1} parent=0
    #allocation5 [shape = 'u8[4096]{0}', space=vmem, size = 0x1000, scoped, tag = 'input window, operand 0, single buffered']
    #allocation6 [shape = 's32[1]{0}', space=sflag, size = 0x4, scoped, tag = 'scoped memory for tpu_custom_call.1']
    #allocation7 [shape = 's32[1]{0}', space=sflag, size = 0x4, scoped, tag = 'scoped memory for tpu_custom_call.1']
    #allocation8 [shape = 'u8[8192]{0}', space=vmem, size = 0x2000, scoped, tag = 'input window, operand 1, single buffered']
    #allocation9 [shape = 's32[1]{0}', space=sflag, size = 0x4, scoped, tag = 'scoped memory for tpu_custom_call.1']
    #allocation10 [shape = 'u8[4096]{0}', space=vmem, size = 0x1000, scoped, tag = 'output window, operand 0, single buffered']
    %10 = vsyncpa [#allocation6], 0
    %11 = vsyncpa [#allocation9], 0
    %12 = vsyncpa [#allocation7], 0
    // Predicated region
    $region2: #{tpu_custom_call.1} parent=1 // pred_check
      _
    $region3: #{tpu_custom_call.1} parent=1 // pred_check_branch
      %14 = sbr.rel (0) target = $region5
    $region4: #{tpu_custom_call.1} parent=1 // pred_region
      %s16 = ssub.s32 128, 128
      %17 = vsyncadd [#allocation6], %s16
      %s19 = sshll.u32 [#allocation5], 4
      %s20 = int_to_ptr.vmem [resolvable:$true] %s19
      %22 = dma.hbm_to_vmem [thread:$0]  %s0, 128, %s20, [#allocation6]
    $region5: #{tpu_custom_call.1} parent=1 // pred_fallthru
      _
    // Predicated region
    $region6: #{tpu_custom_call.1} parent=1 // pred_check
      _
    $region7: #{tpu_custom_call.1} parent=1 // pred_check_branch
      %24 = sbr.rel (0) target = $region9
    $region8: #{tpu_custom_call.1} parent=1 // pred_region
      %s26 = ssub.s32 256, 256
      %27 = vsyncadd [#allocation9], %s26
      %s28 = sshll.u32 [#allocation8], 4
      %s29 = int_to_ptr.vmem [resolvable:$true] %s28
      %34 = dma.hbm_to_vmem [thread:$0]  %s1, 256, %s29, [#allocation9], 64, 64, 4
    $region9: #{tpu_custom_call.1} parent=1 // pred_fallthru
      _
    // Predicated region
    $region10: #{tpu_custom_call.1} parent=1 // pred_check
      _
    $region11: #{tpu_custom_call.1} parent=1 // pred_check_branch
      %36 = sbr.rel (0) target = $region13
    $region12: #{tpu_custom_call.1} parent=1 // pred_region
      _
    $region13: #{tpu_custom_call.1} parent=1 // pred_fallthru
      _
    // Predicated region
    $region14: #{tpu_custom_call.1} parent=1 // pred_check
      _
    $region15: #{tpu_custom_call.1} parent=1 // pred_check_branch
      %38 = sbr.rel (0) target = $region17
    $region16: #{tpu_custom_call.1} parent=1 // pred_region
      _
    $region17: #{tpu_custom_call.1} parent=1 // pred_fallthru
      _
    // Predicated region
    $region18: #{tpu_custom_call.1} parent=1 // pred_check
      _
    $region19: #{tpu_custom_call.1} parent=1 // pred_check_branch
      %40 = sbr.rel (0) target = $region21
    $region20: #{tpu_custom_call.1} parent=1 // pred_region
      %41 = dma.done [#allocation6], 128
    $region21: #{tpu_custom_call.1} parent=1 // pred_fallthru
      _
    // Predicated region
    $region22: #{tpu_custom_call.1} parent=1 // pred_check
      _
    $region23: #{tpu_custom_call.1} parent=1 // pred_check_branch
      %43 = sbr.rel (0) target = $region25
    $region24: #{tpu_custom_call.1} parent=1 // pred_region
      %44 = dma.done [#allocation9], 256
    $region25: #{tpu_custom_call.1} parent=1 // pred_fallthru
      _
    %p46 = scmp.eq.s32.totalorder 0, 0
    // Predicated region
    $region26: #{tpu_custom_call.1} parent=1 // pred_check
      %p47 = pneg %p46
    $region27: #{tpu_custom_call.1} parent=1 // pred_check_branch
      %49 = sbr.rel (%p47) target = $region29
    $region28: #{tpu_custom_call.1} parent=1 // pred_region
      %50 = vst [vmem:[#allocation2] sm:$0xff] 0.0
      %vm51 = vcmask 7168
      %52 = vst.msk [vmem:[#allocation3] sm:$0xff] %vm51, 0.0
    $region29: #{tpu_custom_call.1} parent=1 // pred_fallthru
      _
    %v53 = vld [vmem:[#allocation5] sm:$0xff]
    %v54 = vpack.c.bf16 %v53, %v53
    %v55 = vld [vmem:[#allocation2] sm:$0xff]
    %v56 = vld [vmem:[#allocation8] sm:$0xf]
    %v57 = vld [vmem:[#allocation8 + $0x4] sm:$0xf]
    %v58 = vld [vmem:[#allocation8 + $0x8] sm:$0xf]
    %v59 = vld [vmem:[#allocation8 + $0xc] sm:$0xf]
    %v64 = vunpack.c.l.b16 %v56
    %v65 = vunpack.c.l.b16 %v57
    %v66 = vunpack.c.l.b16 %v58
    %v67 = vunpack.c.l.b16 %v59
    %v68 = vpack.c.b16 %v65, %v64
    %v69 = vpack.c.b16 %v67, %v66
    %vm72 = vcmask 261120
    %v74 = vsel %vm72, %v54, 0
    %76 = vmatprep.subr.bf16.mxu0 0
    %77 = vmatpush1.bf16.msra.mxu0 %v68
    %78 = vmatprep.subr.bf16.mxu0 0
    %79 = vmatpush1.bf16.msra.mxu0 %v69
    %80 = vmatprep.subr.bf16.mxu0 0
    %81 = vmatpush1.bf16.msra.mxu0 0
    %82 = vmatprep.subr.bf16.mxu0 0
    %83 = vmatpush1.bf16.msra.mxu0 0
    %84 = vmatprep.subr.bf16.mxu0 0
    %85 = vmatpush1.bf16.msra.mxu0 0
    %86 = vmatprep.subr.bf16.mxu0 0
    %87 = vmatpush1.bf16.msra.mxu0 0
    %88 = vmatprep.subr.bf16.mxu0 0
    %89 = vmatpush1.bf16.msra.mxu0 0
    %90 = vmatprep.subr.bf16.mxu0 0
    %91 = vmatpush1.bf16.msra.mxu0 0
    %92 = vmatprep.subr.bf16.mxu0 0
    %93 = vmatpush1.bf16.msra.mxu0 0
    %94 = vmatprep.subr.bf16.mxu0 0
    %95 = vmatpush1.bf16.msra.mxu0 0
    %96 = vmatprep.subr.bf16.mxu0 0
    %97 = vmatpush1.bf16.msra.mxu0 0
    %98 = vmatprep.subr.bf16.mxu0 0
    %99 = vmatpush1.bf16.msra.mxu0 0
    %100 = vmatprep.subr.bf16.mxu0 0
    %101 = vmatpush1.bf16.msra.mxu0 0
    %102 = vmatprep.subr.bf16.mxu0 0
    %103 = vmatpush1.bf16.msra.mxu0 0
    %104 = vmatprep.subr.bf16.mxu0 0
    %105 = vmatpush1.bf16.msra.mxu0 0
    %106 = vmatprep.subr.bf16.mxu0 0
    %107 = vmatpush1.bf16.msra.mxu0 0
    %108 = vmatprep.mubr.bf16.mxu0 0
    %109 = vmatmul.mubr.bf16.gmra.mrb[0].mxu0 %v74
    %v110 = vpop.f32.mrb[0].mxu0
    %v111 = vadd.f32 0.0, %v110
    %v112 = vpop.f32.mrb[0].mxu0
    %v113 = vpop.f32.mrb[0].mxu0
    %v114 = vpop.f32.mrb[0].mxu0
    %115 = vdwg.mxu0
    %v116 = vadd.f32 %v55, %v111
    %117 = vst [vmem:[#allocation2] sm:$0xff] %v116
    %v118 = vld [vmem:[#allocation3] sm:$0xff]
    %v119 = vmul.f32 %v53, %v53
    %v120 = vsel %vm72, %v119, 0.0
    %121 = vadd.xlane.f32.xlu0 %v120
    %v122 = vpop.xlane.xlu0 %121
    %v123 = vadd.f32 %v118, %v122
    %vm124 = vcmask 7168
    %125 = vst.msk [vmem:[#allocation3] sm:$0xff] %vm124, %v123
    // Predicated region
    $region30: #{tpu_custom_call.1} parent=1 // pred_check
      %p126 = pneg %p46
    $region31: #{tpu_custom_call.1} parent=1 // pred_check_branch
      %128 = sbr.rel (%p126) target = $region33
    $region32: #{tpu_custom_call.1} parent=1 // pred_region
      %v129 = vld [vmem:[#allocation2] sm:$0xff]
      %v130 = vld [vmem:[#allocation3] sm:$0xff]
      %v131 = vld [vmem:[%s2] sm:$0x1]
      %s132 = sld [smem:[#allocation4]]
      %v133 = vmul.f32 %v129, %v129
      %134 = vadd.xlane.f32.xlu0 %v133
      %v135 = vpop.xlane.xlu0 %134
      %v137 = vlaneseq
      %v138 = vshrl.u32 %v137, 7
      %v139 = vsub.s32 0, %v138
      %v140 = vrot.slane %v131, %v139
      %v142 = vmul.f32 %v129, %v140
      %143 = vadd.xlane.f32.xlu0 %v142
      %v144 = vpop.xlane.xlu0 %143
      %v145 = vmax.f32 %v130, 1e-15
      %v146 = vmax.f32 %v135, 1e-15
      %v147 = vrsqrt.pop %v145
      %v148 = vmul.f32 %v145, %v147
      %vm149 = vcmp.eq.f32.partialorder %v145, inf
      %v150 = vsel %vm149, %v145, %v148
      %vm151 = vcmp.eq.f32.partialorder %v145, 0.0
      %v152 = vand.u32 %v145, 2147483648
      %v153 = vsel %vm151, %v152, %v150
      %v154 = vrsqrt.pop %v146
      %v155 = vmul.f32 %v146, %v154
      %vm156 = vcmp.eq.f32.partialorder %v146, inf
      %v157 = vsel %vm156, %v146, %v155
      %vm158 = vcmp.eq.f32.partialorder %v146, 0.0
      %v159 = vand.u32 %v146, 2147483648
      %v160 = vsel %vm158, %v159, %v157
      %v161 = vrsqrt.pop %v145
      %v162 = vrsqrt.pop %v146
      %v163 = vmax.f32 %v153, 0.0
      %v164 = vmin.f32 %v163, 0.99999
      %v165 = vadd.f32 %v164, 1.0
      %v166 = vsub.f32 1.0, %v164
      %v167 = vrcp.pop %v166
      %v168 = vmul.f32 %v165, %v167
      %v169 = vlog2.pop %v168
      %v170 = vmul.f32 %v169, 0.6931472
      %v171 = vmul.f32 %v170, 0.5
      %v172 = vmul.f32 %v160, %v161
      %v173 = vmul.f32 %v172, %v171
      %v174 = vtanh.pop %v173
      %v175 = vmul.f32 %v174, %v162
      %vm176 = vcmp.lt.f32.partialorder %v135, 1e-24
      %v177 = vsel %vm176, 0.0, %v175
      %v178 = vmul.f32 %v177, %v177
      %v179 = vmul.f32 %v178, %v135
      %v180 = vmax.f32 %v179, 1e-15
      %v181 = vrsqrt.pop %v180
      %v182 = vmul.f32 %v181, 0.999
      %v183 = vmin.f32 %v182, 1.0
      %v184 = vmul.f32 %v177, %v183
      %v185 = vmul.f32 %v179, %v183
      %v186 = vmul.f32 %v185, %v183
      %v187 = vmul.f32 %v184, %v144
      %v188 = vmul.f32 %v187, 2.0
      %v189 = vadd.f32 %v188, 1.0
      %v190 = vstv %s132
      %v191 = vadd.f32 %v189, %v190
      %v192 = vsub.f32 1.0, %v186
      %v193 = vmul.f32 %v186, %v190
      %v194 = vadd.f32 %v189, %v193
      %vm195 = vcmp.ge.f32.partialorder %v194, 0.0
      %v196 = vmax.f32 %v194, 1e-15
      %v197 = vmin.f32 %v194, -1e-15
      %v198 = vsel %vm195, %v196, %v197
      %v199 = vrcp.pop %v198
      %v200 = vmul.f32 %v191, %v191
      %v201 = vmul.f32 %v200, %v186
      %v202 = vmul.f32 %v191, 2.0
      %v203 = vmul.f32 %v202, %v192
      %v204 = vmul.f32 %v203, %v187
      %v205 = vadd.f32 %v201, %v204
      %v206 = vmul.f32 %v192, %v192
      %v207 = vmul.f32 %v206, %v190
      %v208 = vadd.f32 %v205, %v207
      %v209 = vmul.f32 %v208, %v199
      %v210 = vmul.f32 %v209, %v199
      %v211 = vmax.f32 %v210, 1e-15
      %v212 = vrsqrt.pop %v211
      %v213 = vmul.f32 %v212, 0.999
      %v214 = vmin.f32 %v213, 1.0
      %v215 = vmul.f32 %v191, %v184
      %v216 = vmul.f32 %v215, %v199
      %v217 = vmul.f32 %v216, %v214
      %v218 = vmul.f32 %v192, %v199
      %v219 = vmul.f32 %v218, %v214
      %221 = vset.pattern.permute.xlu0 0
      %222 = vperm.xlu0 %221, %v217
      %v223 = vpop.permute.xlu0 %222
      %v225 = vmul.f32 %v223, %v129
      %227 = vset.pattern.permute.xlu0 0
      %228 = vperm.xlu0 %227, %v219
      %v229 = vpop.permute.xlu0 %228
      %v231 = vmul.f32 %v229, %v140
      %v232 = vadd.f32 %v225, %v231
      %233 = vst [vmem:[#allocation10] sm:$0xff] %v232
    $region33: #{tpu_custom_call.1} parent=1 // pred_fallthru
      _
    // Predicated region
    $region34: #{tpu_custom_call.1} parent=1 // pred_check
      _
    $region35: #{tpu_custom_call.1} parent=1 // pred_check_branch
      %235 = sbr.rel (0) target = $region37
    $region36: #{tpu_custom_call.1} parent=1 // pred_region
      %s237 = ssub.s32 128, 128
      %238 = vsyncadd [#allocation7], %s237
      %s240 = sshll.u32 [#allocation10], 4
      %s241 = int_to_ptr.vmem [resolvable:$true] %s240
      %243 = dma.vmem_to_hbm [thread:$0]  %s241, 128, %s4, [#allocation7]
    $region37: #{tpu_custom_call.1} parent=1 // pred_fallthru
      _
    // Predicated region
    $region38: #{tpu_custom_call.1} parent=1 // pred_check
      _
    $region39: #{tpu_custom_call.1} parent=1 // pred_check_branch
      %245 = sbr.rel (0) target = $region41
    $region40: #{tpu_custom_call.1} parent=1 // pred_region
      %246 = dma.done [#allocation7], 128
    $region41: #{tpu_custom_call.1} parent=1 // pred_fallthru
      _
    %247 = vsyncpa [#allocation6], 1
    %248 = vsyncpa [#allocation9], 1
    %249 = vsyncpa [#allocation7], 1

</llo_original>
